<compile_context>
chip_gen: v5e
topology: v5e:2x2
jax: 0.10.0
libtpu: 0.0.40
codegen_flags: <defaults>
</compile_context>

<pallas_src>
import jax
import jax.numpy as jnp
from jax.experimental import pallas as pl
from jax.experimental.pallas import tpu as pltpu

_F = 64           # 8x8 board
_LANE = 128       # vreg lane width
_TB_ALIGN = 1024  # batch-tile granularity: 8 sublanes x 128 lanes of output


def _round_up(n: int, m: int) -> int:
    return ((n + m - 1) // m) * m


def _cdiv(a: int, b: int) -> int:
    return -(-a // b)


def _vmem_capacity_bytes() -> int:
    try:
        cap = getattr(pltpu.get_tpu_info(), "vmem_capacity_bytes", None)
        if cap:
            return int(cap)
    except Exception:
        pass
    return 64 << 20  # v7x (smallest physical VMEM) as the conservative fallback


def _is_multi_tensorcore_chip() -> bool:
    # v7x has 2 TensorCores per chip; v5e/v6e have 1.
    try:
        kind = jax.devices()[0].device_kind.lower()
        return "7" in kind
    except Exception:
        return False


def _simple_ann_kernel(x_ref, w_ref, b_ref, o_ref):
    # x_ref: (gb, 128, 64) native dtype      w_ref: (1, 64) f32 (resident)
    # b_ref: (1,)  f32 in SMEM               o_ref: (gb, 128) f32 (lane-dense)
    x = x_ref[...].astype(jnp.float32)            # cast after the (narrow) load
    w = w_ref[...]                                # (1, 64) broadcasts over (gb, 128, 64)
    y = jnp.sum(x * w, axis=-1)                   # VPU mul + XLU lane reduce -> (gb, 128)
    o_ref[...] = jnp.tanh(y + b_ref[0])           # EUP tanh on a full-lane slab


def simple_ann_forward(x, weight, bias, *, block_b=None, use_pallas=None):
    """tanh(x @ weight.T + bias).

    x: (B, 64) boards in any real dtype (int8 recommended for reversi {-1,0,1});
    weight: (1, 64) (PyTorch nn.Linear layout); bias: (1,).
    block_b: optional cap on the batch tile (rounded up to 1024); None = auto
             (derived from this chip's VMEM capacity, 8192-16384 rows).
    use_pallas: force/skip the Pallas path; None = auto (Pallas for B >= 4096).
    """
    B, F = x.shape
    assert F == _F

    w = weight.astype(jnp.float32).reshape(1, _F)
    b = bias.astype(jnp.float32).reshape((1,))

    if use_pallas is None:
        use_pallas = B >= 4096
    if not use_pallas:
        # Small-batch fast path: the pallas call would be pure launch overhead.
        xf = x.astype(jnp.float32)
        return jnp.tanh(
            jnp.dot(xf, w.T, precision=jax.lax.Precision.HIGHEST) + b)

    # ---------------- batch-tile selection --------------------------------
    vmem_cap = _vmem_capacity_bytes()
    # Per board row, double-buffered in VMEM: input 128 lanes (64 feature
    # lanes padded to 128) * 4 B * 2 buffers = 1024 B, output 4 B * 2 = 8 B.
    bytes_per_row = _LANE * 4 * 2 + 4 * 2
    budget = vmem_cap // 4
    tb_max = max(8192, min(16384, (budget // bytes_per_row) // _TB_ALIGN * _TB_ALIGN))
    if block_b is not None:
        tb_max = max(_TB_ALIGN, _round_up(block_b, _TB_ALIGN))

    multi_core = _is_multi_tensorcore_chip()
    steps = max(1, _cdiv(B, tb_max))
    if multi_core and B >= 2 * _TB_ALIGN:
        steps = _round_up(max(steps, 2), 2)       # >=2 and even: keep both TCs busy
    tb = min(tb_max, _round_up(_cdiv(B, steps), _TB_ALIGN))
    b_pad = _round_up(B, tb)

    if b_pad != B:
        x = jnp.pad(x, ((0, b_pad - B), (0, 0)))  # padded rows sliced off below
    # Free split of the batch dim: element [g, i, j] = board g*128+i, feature j.
    xg = x.reshape(b_pad // _LANE, _LANE, _F)

    gb = tb // _LANE
    grid = (b_pad // tb,)

    # Raise scoped VMEM to cover the double-buffered tiles (v5e default: 16 MiB).
    vmem_needed = 2 * (gb * _LANE * _LANE * 4 + gb * _LANE * 4) + (1 << 20)
    vmem_limit = int(min(max(vmem_needed, 32 << 20), (vmem_cap * 3) // 4))

    dims = (pltpu.CORE_PARALLEL,) if multi_core else ("parallel",)

    out = pl.pallas_call(
        _simple_ann_kernel,
        out_shape=jax.ShapeDtypeStruct((b_pad // _LANE, _LANE), jnp.float32),
        grid_spec=pltpu.PrefetchScalarGridSpec(
            num_scalar_prefetch=0,
            grid=grid,
            in_specs=[
                pl.BlockSpec((gb, _LANE, _F), lambda i: (i, 0, 0)),   # streamed boards
                pl.BlockSpec((1, _F), lambda i: (0, 0)),              # resident weight
                pl.BlockSpec(memory_space=pltpu.MemorySpace.SMEM),    # bias scalar
            ],
            out_specs=pl.BlockSpec((gb, _LANE), lambda i: (i, 0)),    # lane-dense slab
        ),
        compiler_params=pltpu.CompilerParams(
            dimension_semantics=dims,
            vmem_limit_bytes=vmem_limit,
        ),
    )(xg, w, b)
    return out.reshape(b_pad, 1)[:B]


def init_params(key):
    # PyTorch nn.Linear default init: U(-1/sqrt(in_features), 1/sqrt(in_features))
    kw, kb = jax.random.split(key)
    bound = 1.0 / jnp.sqrt(64.0)
    weight = jax.random.uniform(kw, (1, 64), jnp.float32, -bound, bound)
    bias = jax.random.uniform(kb, (1,), jnp.float32, -bound, bound)
    return weight, bias


def _reference(x, weight, bias):
    xf = x.astype(jnp.float32)
    return jnp.tanh(
        jnp.matmul(xf, weight.T, precision=jax.lax.Precision.HIGHEST) + bias)


if __name__ == "__main__":
    key = jax.random.PRNGKey(0)
    kx, kp = jax.random.split(key)
    weight, bias = init_params(kp)

    # 1) Tiny batch (module's natural single-board use): fast path (no pallas).
    B = 8
    x = jax.random.normal(kx, (B, _F), jnp.float32)
    out = jax.block_until_ready(simple_ann_forward(x, weight, bias))
    assert out.shape == (B, 1)
    assert jnp.allclose(out, _reference(x, weight, bias), atol=1e-5, rtol=1e-5)

    # 2) Forced Pallas path, non-tile-multiple batch, single grid step.
    B2 = 300
    x2 = jax.random.normal(kx, (B2, _F), jnp.float32)
    out2 = jax.block_until_ready(
        simple_ann_forward(x2, weight, bias, use_pallas=True))
    assert out2.shape == (B2, 1)
    assert jnp.allclose(out2, _reference(x2, weight, bias), atol=1e-5, rtol=1e-5)

    # 3) int8 boards ({-1,0,1}, the real reversi input dtype), multi-step grid
    #    with padding (block_b=1024 -> 2 grid steps).
    B3 = 2000
    x3 = jax.random.randint(kx, (B3, _F), -1, 2).astype(jnp.int8)
    out3 = jax.block_until_ready(
        simple_ann_forward(x3, weight, bias, block_b=1024, use_pallas=True))
    assert out3.shape == (B3, 1)
    assert jnp.allclose(out3, _reference(x3, weight, bias), atol=1e-5, rtol=1e-5)

    # 4) Auto path (B >= 4096 triggers Pallas with the VMEM-derived tile).
    B4 = 4096
    x4 = jax.random.normal(kx, (B4, _F), jnp.float32)
    out4 = jax.block_until_ready(simple_ann_forward(x4, weight, bias))
    assert out4.shape == (B4, 1)
    assert jnp.allclose(out4, _reference(x4, weight, bias), atol=1e-5, rtol=1e-5)

    print("KERNEL_OK")
</pallas_src>

<mosaic_0001>
module attributes {stable_mosaic.version = 11 : i64} {
  func.func @_simple_ann_kernel(%arg0: i32, %arg1: memref<8x128x64xf32, #tpu.memory_space<vmem>>, %arg2: memref<1x64xf32, #tpu.memory_space<vmem>>, %arg3: memref<1xf32, #tpu.memory_space<smem>>, %arg4: memref<8x128xf32, #tpu.memory_space<vmem>>) attributes {dimension_semantics = [#tpu.dimension_semantics<parallel>], iteration_bounds = array<i64: 1>, scalar_prefetch = 0 : i64, scratch_operands = 0 : i64, tpu.core_type = #tpu.core_type<tc>, window_params = [{transform_indices = @transform_0, window_bounds = array<i64: 8, 128, 64>}, {pipeline_mode = #tpu.pipeline_mode<synchronous>, transform_indices = @transform_1, window_bounds = array<i64: 1, 64>}, {transform_indices = @transform_2, window_bounds = array<i64: 1>}, {transform_indices = @transform_3, window_bounds = array<i64: 8, 128>}]} {
    %c0 = arith.constant 0 : index
    %c0_0 = arith.constant 0 : index
    %c0_1 = arith.constant 0 : index
    %0 = vector.load %arg1[%c0, %c0_0, %c0_1] : memref<8x128x64xf32, #tpu.memory_space<vmem>>, vector<8x128x64xf32>
    %c0_2 = arith.constant 0 : index
    %c0_3 = arith.constant 0 : index
    %1 = vector.load %arg2[%c0_2, %c0_3] : memref<1x64xf32, #tpu.memory_space<vmem>>, vector<1x64xf32>
    %2 = vector.shape_cast %1 : vector<1x64xf32> to vector<1x1x64xf32>
    %3 = vector.broadcast %2 : vector<1x1x64xf32> to vector<8x128x64xf32>
    %4 = arith.mulf %0, %3 : vector<8x128x64xf32>
    %cst = arith.constant dense<0.000000e+00> : vector<8x128xf32>
    %5 = vector.multi_reduction <add>, %4, %cst [2] : vector<8x128x64xf32> to vector<8x128xf32>
    %c0_4 = arith.constant 0 : index
    %6 = memref.load %arg3[%c0_4] : memref<1xf32, #tpu.memory_space<smem>>
    %7 = vector.broadcast %6 : f32 to vector<8x128xf32>
    %8 = arith.addf %5, %7 : vector<8x128xf32>
    %9 = math.tanh %8 : vector<8x128xf32>
    %c0_5 = arith.constant 0 : index
    %c0_6 = arith.constant 0 : index
    %10 = vector.load %arg4[%c0_5, %c0_6] : memref<8x128xf32, #tpu.memory_space<vmem>>, vector<8x128xf32>
    tpu.vector_store %arg4[%c0_5, %c0_6], %9 {strides = array<i32>} : memref<8x128xf32, #tpu.memory_space<vmem>>, vector<8x128xf32>,
    return
  }
  func.func @transform_0(%arg0: i32) -> (i32, i32, i32) {
    %c0_i32 = arith.constant 0 : i32
    %c0_i32_0 = arith.constant 0 : i32
    %c0_i32_1 = arith.constant 0 : i32
    return %arg0, %c0_i32, %c0_i32_0 : i32, i32, i32
  }
  func.func @transform_1(%arg0: i32) -> (i32, i32) {
    %c0_i32 = arith.constant 0 : i32
    %c0_i32_0 = arith.constant 0 : i32
    %c0_i32_1 = arith.constant 0 : i32
    return %c0_i32, %c0_i32_0 : i32, i32
  }
  func.func @transform_2(%arg0: i32) -> i32 {
    %c0_i32 = arith.constant 0 : i32
    %c0_i32_0 = arith.constant 0 : i32
    return %c0_i32 : i32
  }
  func.func @transform_3(%arg0: i32) -> (i32, i32) {
    %c0_i32 = arith.constant 0 : i32
    %c0_i32_0 = arith.constant 0 : i32
    return %arg0, %c0_i32 : i32, i32
  }
}

</mosaic_0001>

<llo_original>
// kernel: tpu_custom_call.1
$region0: #{tpu_custom_call.1}
  #allocation0 [shape = 'u32[]', space=smem, size = 0x4, offset = 0x4, fixed_abs, tag = 'smem constant byte address 0x4 - core index']
  #allocation1 [shape = 'u32[72,128]{1,0:T(1,128)}', space=vmem, size = 0x9000, scoped, tag = 'internal scratch']
  #allocation2 [shape = 'f32[1]{0:T(128)S(6)}', space=smem, size = 0x200, scoped, tag = 'scoped memory for tpu_custom_call.1']
  %s0 = inlined_call_operand.vmem [shape: f32[8,128,64], index: 0, kind: input, shape index: {}]
  %s1 = inlined_call_operand.vmem [shape: f32[1,64], index: 1, kind: input, shape index: {}]
  %s2 = inlined_call_operand.<no memory space> [shape: f32[1], index: 2, kind: input, shape index: {}]
  %s3 = inlined_call_operand.hbm [shape: f32[8,128], index: 3, kind: output, shape index: {}]
  %s4 = sld [smem:[#allocation0]]
  $region22: #{tpu_custom_call.1} parent=0
    _
  %s6 = ssub.s32 1, %s4
  %s7 = scalar_select 0, %s6, %s4
  %8 = sst [smem:[#allocation2]] %s2
  $region1: #{tpu_custom_call.1} parent=0
    #allocation3 [shape = 'u8[4096]{0}', space=vmem, size = 0x1000, scoped, tag = 'output window, operand 0, single buffered']
    #allocation4 [shape = 's32[1]{0}', space=sflag, size = 0x4, scoped, tag = 'scoped memory for tpu_custom_call.1']
    %9 = vsyncpa [#allocation4], 0
    // Predicated region
    $region2: #{tpu_custom_call.1} parent=1 // pred_check
      _
    $region3: #{tpu_custom_call.1} parent=1 // pred_check_branch
      %11 = sbr.rel (0) target = $region5
    $region4: #{tpu_custom_call.1} parent=1 // pred_region
      _
    $region5: #{tpu_custom_call.1} parent=1 // pred_fallthru
      _
    // Predicated region
    $region6: #{tpu_custom_call.1} parent=1 // pred_check
      _
    $region7: #{tpu_custom_call.1} parent=1 // pred_check_branch
      %13 = sbr.rel (0) target = $region9
    $region8: #{tpu_custom_call.1} parent=1 // pred_region
      _
    $region9: #{tpu_custom_call.1} parent=1 // pred_fallthru
      _
    // Predicated region
    $region10: #{tpu_custom_call.1} parent=1 // pred_check
      _
    $region11: #{tpu_custom_call.1} parent=1 // pred_check_branch
      %15 = sbr.rel (0) target = $region13
    $region12: #{tpu_custom_call.1} parent=1 // pred_region
      _
    $region13: #{tpu_custom_call.1} parent=1 // pred_fallthru
      _
    %v16 = vld [vmem:[%s0] sm:$0xff]
    %v17 = vld [vmem:[%s0 + $0x8] sm:$0xff]
    %v18 = vld [vmem:[%s0 + $0x10] sm:$0xff]
    %v19 = vld [vmem:[%s0 + $0x18] sm:$0xff]
    %v20 = vld [vmem:[%s0 + $0x20] sm:$0xff]
    %v21 = vld [vmem:[%s0 + $0x28] sm:$0xff]
    %v22 = vld [vmem:[%s0 + $0x30] sm:$0xff]
    %v23 = vld [vmem:[%s0 + $0x38] sm:$0xff]
    %v24 = vld [vmem:[%s0 + $0x40] sm:$0xff]
    %v25 = vld [vmem:[%s0 + $0x48] sm:$0xff]
    %v26 = vld [vmem:[%s0 + $0x50] sm:$0xff]
    %v27 = vld [vmem:[%s0 + $0x58] sm:$0xff]
    %v28 = vld [vmem:[%s0 + $0x60] sm:$0xff]
    %v29 = vld [vmem:[%s0 + $0x68] sm:$0xff]
    %v30 = vld [vmem:[%s0 + $0x70] sm:$0xff]
    %v31 = vld [vmem:[%s0 + $0x78] sm:$0xff]
    %v32 = vld [vmem:[%s0 + $0x80] sm:$0xff]
    %v33 = vld [vmem:[%s0 + $0x88] sm:$0xff]
    %v34 = vld [vmem:[%s0 + $0x90] sm:$0xff]
    %v35 = vld [vmem:[%s0 + $0x98] sm:$0xff]
    %v36 = vld [vmem:[%s0 + $0xa0] sm:$0xff]
    %v37 = vld [vmem:[%s0 + $0xa8] sm:$0xff]
    %v38 = vld [vmem:[%s0 + $0xb0] sm:$0xff]
    %v39 = vld [vmem:[%s0 + $0xb8] sm:$0xff]
    %v40 = vld [vmem:[%s0 + $0xc0] sm:$0xff]
    %v41 = vld [vmem:[%s0 + $0xc8] sm:$0xff]
    %v42 = vld [vmem:[%s0 + $0xd0] sm:$0xff]
    %v43 = vld [vmem:[%s0 + $0xd8] sm:$0xff]
    %v44 = vld [vmem:[%s0 + $0xe0] sm:$0xff]
    %v45 = vld [vmem:[%s0 + $0xe8] sm:$0xff]
    %v46 = vld [vmem:[%s0 + $0xf0] sm:$0xff]
    %v47 = vld [vmem:[%s0 + $0xf8] sm:$0xff]
    %v48 = vld [vmem:[%s0 + $0x100] sm:$0xff]
    %v49 = vld [vmem:[%s0 + $0x108] sm:$0xff]
    %v50 = vld [vmem:[%s0 + $0x110] sm:$0xff]
    %v51 = vld [vmem:[%s0 + $0x118] sm:$0xff]
    %v52 = vld [vmem:[%s0 + $0x120] sm:$0xff]
    %v53 = vld [vmem:[%s0 + $0x128] sm:$0xff]
    %v54 = vld [vmem:[%s0 + $0x130] sm:$0xff]
    %v55 = vld [vmem:[%s0 + $0x138] sm:$0xff]
    %v56 = vld [vmem:[%s0 + $0x140] sm:$0xff]
    %v57 = vld [vmem:[%s0 + $0x148] sm:$0xff]
    %v58 = vld [vmem:[%s0 + $0x150] sm:$0xff]
    %v59 = vld [vmem:[%s0 + $0x158] sm:$0xff]
    %v60 = vld [vmem:[%s0 + $0x160] sm:$0xff]
    %v61 = vld [vmem:[%s0 + $0x168] sm:$0xff]
    %v62 = vld [vmem:[%s0 + $0x170] sm:$0xff]
    %v63 = vld [vmem:[%s0 + $0x178] sm:$0xff]
    %v64 = vld [vmem:[%s0 + $0x180] sm:$0xff]
    %v65 = vld [vmem:[%s0 + $0x188] sm:$0xff]
    %v66 = vld [vmem:[%s0 + $0x190] sm:$0xff]
    %v67 = vld [vmem:[%s0 + $0x198] sm:$0xff]
    %v68 = vld [vmem:[%s0 + $0x1a0] sm:$0xff]
    %v69 = vld [vmem:[%s0 + $0x1a8] sm:$0xff]
    %v70 = vld [vmem:[%s0 + $0x1b0] sm:$0xff]
    %v71 = vld [vmem:[%s0 + $0x1b8] sm:$0xff]
    %v72 = vld [vmem:[%s0 + $0x1c0] sm:$0xff]
    %v73 = vld [vmem:[%s0 + $0x1c8] sm:$0xff]
    %v74 = vld [vmem:[%s0 + $0x1d0] sm:$0xff]
    %v75 = vld [vmem:[%s0 + $0x1d8] sm:$0xff]
    %v76 = vld [vmem:[%s0 + $0x1e0] sm:$0xff]
    %v77 = vld [vmem:[%s0 + $0x1e8] sm:$0xff]
    %v78 = vld [vmem:[%s0 + $0x1f0] sm:$0xff]
    %v79 = vld [vmem:[%s0 + $0x1f8] sm:$0xff]
    %v80 = vld [vmem:[%s0 + $0x200] sm:$0xff]
    %v81 = vld [vmem:[%s0 + $0x208] sm:$0xff]
    %v82 = vld [vmem:[%s0 + $0x210] sm:$0xff]
    %v83 = vld [vmem:[%s0 + $0x218] sm:$0xff]
    %v84 = vld [vmem:[%s0 + $0x220] sm:$0xff]
    %v85 = vld [vmem:[%s0 + $0x228] sm:$0xff]
    %v86 = vld [vmem:[%s0 + $0x230] sm:$0xff]
    %v87 = vld [vmem:[%s0 + $0x238] sm:$0xff]
    %v88 = vld [vmem:[%s0 + $0x240] sm:$0xff]
    %v89 = vld [vmem:[%s0 + $0x248] sm:$0xff]
    %v90 = vld [vmem:[%s0 + $0x250] sm:$0xff]
    %v91 = vld [vmem:[%s0 + $0x258] sm:$0xff]
    %v92 = vld [vmem:[%s0 + $0x260] sm:$0xff]
    %v93 = vld [vmem:[%s0 + $0x268] sm:$0xff]
    %v94 = vld [vmem:[%s0 + $0x270] sm:$0xff]
    %v95 = vld [vmem:[%s0 + $0x278] sm:$0xff]
    %v96 = vld [vmem:[%s0 + $0x280] sm:$0xff]
    %v97 = vld [vmem:[%s0 + $0x288] sm:$0xff]
    %v98 = vld [vmem:[%s0 + $0x290] sm:$0xff]
    %v99 = vld [vmem:[%s0 + $0x298] sm:$0xff]
    %v100 = vld [vmem:[%s0 + $0x2a0] sm:$0xff]
    %v101 = vld [vmem:[%s0 + $0x2a8] sm:$0xff]
    %v102 = vld [vmem:[%s0 + $0x2b0] sm:$0xff]
    %v103 = vld [vmem:[%s0 + $0x2b8] sm:$0xff]
    %v104 = vld [vmem:[%s0 + $0x2c0] sm:$0xff]
    %v105 = vld [vmem:[%s0 + $0x2c8] sm:$0xff]
    %v106 = vld [vmem:[%s0 + $0x2d0] sm:$0xff]
    %v107 = vld [vmem:[%s0 + $0x2d8] sm:$0xff]
    %v108 = vld [vmem:[%s0 + $0x2e0] sm:$0xff]
    %v109 = vld [vmem:[%s0 + $0x2e8] sm:$0xff]
    %v110 = vld [vmem:[%s0 + $0x2f0] sm:$0xff]
    %v111 = vld [vmem:[%s0 + $0x2f8] sm:$0xff]
    %v112 = vld [vmem:[%s0 + $0x300] sm:$0xff]
    %v113 = vld [vmem:[%s0 + $0x308] sm:$0xff]
    %v114 = vld [vmem:[%s0 + $0x310] sm:$0xff]
    %v115 = vld [vmem:[%s0 + $0x318] sm:$0xff]
    %v116 = vld [vmem:[%s0 + $0x320] sm:$0xff]
    %v117 = vld [vmem:[%s0 + $0x328] sm:$0xff]
    %v118 = vld [vmem:[%s0 + $0x330] sm:$0xff]
    %v119 = vld [vmem:[%s0 + $0x338] sm:$0xff]
    %v120 = vld [vmem:[%s0 + $0x340] sm:$0xff]
    %v121 = vld [vmem:[%s0 + $0x348] sm:$0xff]
    %v122 = vld [vmem:[%s0 + $0x350] sm:$0xff]
    %v123 = vld [vmem:[%s0 + $0x358] sm:$0xff]
    %v124 = vld [vmem:[%s0 + $0x360] sm:$0xff]
    %v125 = vld [vmem:[%s0 + $0x368] sm:$0xff]
    %v126 = vld [vmem:[%s0 + $0x370] sm:$0xff]
    %v127 = vld [vmem:[%s0 + $0x378] sm:$0xff]
    %v128 = vld [vmem:[%s0 + $0x380] sm:$0xff]
    %v129 = vld [vmem:[%s0 + $0x388] sm:$0xff]
    %v130 = vld [vmem:[%s0 + $0x390] sm:$0xff]
    %v131 = vld [vmem:[%s0 + $0x398] sm:$0xff]
    %v132 = vld [vmem:[%s0 + $0x3a0] sm:$0xff]
    %v133 = vld [vmem:[%s0 + $0x3a8] sm:$0xff]
    %v134 = vld [vmem:[%s0 + $0x3b0] sm:$0xff]
    %v135 = vld [vmem:[%s0 + $0x3b8] sm:$0xff]
    %v136 = vld [vmem:[%s0 + $0x3c0] sm:$0xff]
    %v137 = vld [vmem:[%s0 + $0x3c8] sm:$0xff]
    %v138 = vld [vmem:[%s0 + $0x3d0] sm:$0xff]
    %v139 = vld [vmem:[%s0 + $0x3d8] sm:$0xff]
    %v140 = vld [vmem:[%s0 + $0x3e0] sm:$0xff]
    %v141 = vld [vmem:[%s0 + $0x3e8] sm:$0xff]
    %v142 = vld [vmem:[%s0 + $0x3f0] sm:$0xff]
    %v143 = vld [vmem:[%s0 + $0x3f8] sm:$0xff]
    %v144 = vld [vmem:[%s1] sm:$0x1]
    %v146 = vperm.slane %v144, 0
    %v148 = vmul.f32 %v16, %v146
    %v149 = vmul.f32 %v17, %v146
    %v150 = vmul.f32 %v18, %v146
    %v151 = vmul.f32 %v19, %v146
    %v152 = vmul.f32 %v20, %v146
    %v153 = vmul.f32 %v21, %v146
    %v154 = vmul.f32 %v22, %v146
    %v155 = vmul.f32 %v23, %v146
    %v156 = vmul.f32 %v24, %v146
    %v157 = vmul.f32 %v25, %v146
    %v158 = vmul.f32 %v26, %v146
    %v159 = vmul.f32 %v27, %v146
    %v160 = vmul.f32 %v28, %v146
    %v161 = vmul.f32 %v29, %v146
    %v162 = vmul.f32 %v30, %v146
    %v163 = vmul.f32 %v31, %v146
    %v164 = vmul.f32 %v32, %v146
    %v165 = vmul.f32 %v33, %v146
    %v166 = vmul.f32 %v34, %v146
    %v167 = vmul.f32 %v35, %v146
    %v168 = vmul.f32 %v36, %v146
    %v169 = vmul.f32 %v37, %v146
    %v170 = vmul.f32 %v38, %v146
    %v171 = vmul.f32 %v39, %v146
    %v172 = vmul.f32 %v40, %v146
    %v173 = vmul.f32 %v41, %v146
    %v174 = vmul.f32 %v42, %v146
    %v175 = vmul.f32 %v43, %v146
    %v176 = vmul.f32 %v44, %v146
    %v177 = vmul.f32 %v45, %v146
    %v178 = vmul.f32 %v46, %v146
    %v179 = vmul.f32 %v47, %v146
    %v180 = vmul.f32 %v48, %v146
    %v181 = vmul.f32 %v49, %v146
    %v182 = vmul.f32 %v50, %v146
    %v183 = vmul.f32 %v51, %v146
    %v184 = vmul.f32 %v52, %v146
    %v185 = vmul.f32 %v53, %v146
    %v186 = vmul.f32 %v54, %v146
    %v187 = vmul.f32 %v55, %v146
    %v188 = vmul.f32 %v56, %v146
    %v189 = vmul.f32 %v57, %v146
    %v190 = vmul.f32 %v58, %v146
    %v191 = vmul.f32 %v59, %v146
    %v192 = vmul.f32 %v60, %v146
    %v193 = vmul.f32 %v61, %v146
    %v194 = vmul.f32 %v62, %v146
    %v195 = vmul.f32 %v63, %v146
    %v196 = vmul.f32 %v64, %v146
    %v197 = vmul.f32 %v65, %v146
    %v198 = vmul.f32 %v66, %v146
    %v199 = vmul.f32 %v67, %v146
    %v200 = vmul.f32 %v68, %v146
    %v201 = vmul.f32 %v69, %v146
    %v202 = vmul.f32 %v70, %v146
    %v203 = vmul.f32 %v71, %v146
    %v204 = vmul.f32 %v72, %v146
    %v205 = vmul.f32 %v73, %v146
    %v206 = vmul.f32 %v74, %v146
    %v207 = vmul.f32 %v75, %v146
    %v208 = vmul.f32 %v76, %v146
    %v209 = vmul.f32 %v77, %v146
    %v210 = vmul.f32 %v78, %v146
    %v211 = vmul.f32 %v79, %v146
    %v212 = vmul.f32 %v80, %v146
    %v213 = vmul.f32 %v81, %v146
    %v214 = vmul.f32 %v82, %v146
    %v215 = vmul.f32 %v83, %v146
    %v216 = vmul.f32 %v84, %v146
    %v217 = vmul.f32 %v85, %v146
    %v218 = vmul.f32 %v86, %v146
    %v219 = vmul.f32 %v87, %v146
    %v220 = vmul.f32 %v88, %v146
    %v221 = vmul.f32 %v89, %v146
    %v222 = vmul.f32 %v90, %v146
    %v223 = vmul.f32 %v91, %v146
    %v224 = vmul.f32 %v92, %v146
    %v225 = vmul.f32 %v93, %v146
    %v226 = vmul.f32 %v94, %v146
    %v227 = vmul.f32 %v95, %v146
    %v228 = vmul.f32 %v96, %v146
    %v229 = vmul.f32 %v97, %v146
    %v230 = vmul.f32 %v98, %v146
    %v231 = vmul.f32 %v99, %v146
    %v232 = vmul.f32 %v100, %v146
    %v233 = vmul.f32 %v101, %v146
    %v234 = vmul.f32 %v102, %v146
    %v235 = vmul.f32 %v103, %v146
    %v236 = vmul.f32 %v104, %v146
    %v237 = vmul.f32 %v105, %v146
    %v238 = vmul.f32 %v106, %v146
    %v239 = vmul.f32 %v107, %v146
    %v240 = vmul.f32 %v108, %v146
    %v241 = vmul.f32 %v109, %v146
    %v242 = vmul.f32 %v110, %v146
    %v243 = vmul.f32 %v111, %v146
    %v244 = vmul.f32 %v112, %v146
    %v245 = vmul.f32 %v113, %v146
    %v246 = vmul.f32 %v114, %v146
    %v247 = vmul.f32 %v115, %v146
    %v248 = vmul.f32 %v116, %v146
    %v249 = vmul.f32 %v117, %v146
    %v250 = vmul.f32 %v118, %v146
    %v251 = vmul.f32 %v119, %v146
    %v252 = vmul.f32 %v120, %v146
    %v253 = vmul.f32 %v121, %v146
    %v254 = vmul.f32 %v122, %v146
    %v255 = vmul.f32 %v123, %v146
    %v256 = vmul.f32 %v124, %v146
    %v257 = vmul.f32 %v125, %v146
    %v258 = vmul.f32 %v126, %v146
    %v259 = vmul.f32 %v127, %v146
    %v260 = vmul.f32 %v128, %v146
    %v261 = vmul.f32 %v129, %v146
    %v262 = vmul.f32 %v130, %v146
    %v263 = vmul.f32 %v131, %v146
    %v264 = vmul.f32 %v132, %v146
    %v265 = vmul.f32 %v133, %v146
    %v266 = vmul.f32 %v134, %v146
    %v267 = vmul.f32 %v135, %v146
    %v268 = vmul.f32 %v136, %v146
    %v269 = vmul.f32 %v137, %v146
    %v270 = vmul.f32 %v138, %v146
    %v271 = vmul.f32 %v139, %v146
    %v272 = vmul.f32 %v140, %v146
    %v273 = vmul.f32 %v141, %v146
    %v274 = vmul.f32 %v142, %v146
    %v275 = vmul.f32 %v143, %v146
    %vm276 = vcmask 523264
    %v277 = vsel %vm276, %v148, 0.0
    %278 = vadd.xlane.f32.xlu0 %v277
    %v279 = vpop.xlane.xlu0 %278
    %v280 = vsel %vm276, %v149, 0.0
    %281 = vadd.xlane.f32.xlu0 %v280
    %v282 = vpop.xlane.xlu0 %281
    %v283 = vsel %vm276, %v150, 0.0
    %284 = vadd.xlane.f32.xlu0 %v283
    %v285 = vpop.xlane.xlu0 %284
    %v286 = vsel %vm276, %v151, 0.0
    %287 = vadd.xlane.f32.xlu0 %v286
    %v288 = vpop.xlane.xlu0 %287
    %v289 = vsel %vm276, %v152, 0.0
    %290 = vadd.xlane.f32.xlu0 %v289
    %v291 = vpop.xlane.xlu0 %290
    %v292 = vsel %vm276, %v153, 0.0
    %293 = vadd.xlane.f32.xlu0 %v292
    %v294 = vpop.xlane.xlu0 %293
    %v295 = vsel %vm276, %v154, 0.0
    %296 = vadd.xlane.f32.xlu0 %v295
    %v297 = vpop.xlane.xlu0 %296
    %v298 = vsel %vm276, %v155, 0.0
    %299 = vadd.xlane.f32.xlu0 %v298
    %v300 = vpop.xlane.xlu0 %299
    %v301 = vsel %vm276, %v156, 0.0
    %302 = vadd.xlane.f32.xlu0 %v301
    %v303 = vpop.xlane.xlu0 %302
    %v304 = vsel %vm276, %v157, 0.0
    %305 = vadd.xlane.f32.xlu0 %v304
    %v306 = vpop.xlane.xlu0 %305
    %v307 = vsel %vm276, %v158, 0.0
    %308 = vadd.xlane.f32.xlu0 %v307
    %v309 = vpop.xlane.xlu0 %308
    %v310 = vsel %vm276, %v159, 0.0
    %311 = vadd.xlane.f32.xlu0 %v310
    %v312 = vpop.xlane.xlu0 %311
    %v313 = vsel %vm276, %v160, 0.0
    %314 = vadd.xlane.f32.xlu0 %v313
    %v315 = vpop.xlane.xlu0 %314
    %v316 = vsel %vm276, %v161, 0.0
    %317 = vadd.xlane.f32.xlu0 %v316
    %v318 = vpop.xlane.xlu0 %317
    %v319 = vsel %vm276, %v162, 0.0
    %320 = vadd.xlane.f32.xlu0 %v319
    %v321 = vpop.xlane.xlu0 %320
    %v322 = vsel %vm276, %v163, 0.0
    %323 = vadd.xlane.f32.xlu0 %v322
    %v324 = vpop.xlane.xlu0 %323
    %v325 = vsel %vm276, %v164, 0.0
    %326 = vadd.xlane.f32.xlu0 %v325
    %v327 = vpop.xlane.xlu0 %326
    %v328 = vsel %vm276, %v165, 0.0
    %329 = vadd.xlane.f32.xlu0 %v328
    %v330 = vpop.xlane.xlu0 %329
    %v331 = vsel %vm276, %v166, 0.0
    %332 = vadd.xlane.f32.xlu0 %v331
    %v333 = vpop.xlane.xlu0 %332
    %v334 = vsel %vm276, %v167, 0.0
    %335 = vadd.xlane.f32.xlu0 %v334
    %v336 = vpop.xlane.xlu0 %335
    %v337 = vsel %vm276, %v168, 0.0
    %338 = vadd.xlane.f32.xlu0 %v337
    %v339 = vpop.xlane.xlu0 %338
    %v340 = vsel %vm276, %v169, 0.0
    %341 = vadd.xlane.f32.xlu0 %v340
    %v342 = vpop.xlane.xlu0 %341
    %v343 = vsel %vm276, %v170, 0.0
    %344 = vadd.xlane.f32.xlu0 %v343
    %v345 = vpop.xlane.xlu0 %344
    %v346 = vsel %vm276, %v171, 0.0
    %347 = vadd.xlane.f32.xlu0 %v346
    %v348 = vpop.xlane.xlu0 %347
    %v349 = vsel %vm276, %v172, 0.0
    %350 = vadd.xlane.f32.xlu0 %v349
    %v351 = vpop.xlane.xlu0 %350
    %v352 = vsel %vm276, %v173, 0.0
    %353 = vadd.xlane.f32.xlu0 %v352
    %v354 = vpop.xlane.xlu0 %353
    %v355 = vsel %vm276, %v174, 0.0
    %356 = vadd.xlane.f32.xlu0 %v355
    %v357 = vpop.xlane.xlu0 %356
    %v358 = vsel %vm276, %v175, 0.0
    %359 = vadd.xlane.f32.xlu0 %v358
    %v360 = vpop.xlane.xlu0 %359
    %v361 = vsel %vm276, %v176, 0.0
    %362 = vadd.xlane.f32.xlu0 %v361
    %v363 = vpop.xlane.xlu0 %362
    %v364 = vsel %vm276, %v177, 0.0
    %365 = vadd.xlane.f32.xlu0 %v364
    %v366 = vpop.xlane.xlu0 %365
    %v367 = vsel %vm276, %v178, 0.0
    %368 = vadd.xlane.f32.xlu0 %v367
    %v369 = vpop.xlane.xlu0 %368
    %v370 = vsel %vm276, %v179, 0.0
    %371 = vadd.xlane.f32.xlu0 %v370
    %v372 = vpop.xlane.xlu0 %371
    %v373 = vsel %vm276, %v180, 0.0
    %374 = vadd.xlane.f32.xlu0 %v373
    %v375 = vpop.xlane.xlu0 %374
    %v376 = vsel %vm276, %v181, 0.0
    %377 = vadd.xlane.f32.xlu0 %v376
    %v378 = vpop.xlane.xlu0 %377
    %v379 = vsel %vm276, %v182, 0.0
    %380 = vadd.xlane.f32.xlu0 %v379
    %v381 = vpop.xlane.xlu0 %380
    %v382 = vsel %vm276, %v183, 0.0
    %383 = vadd.xlane.f32.xlu0 %v382
    %v384 = vpop.xlane.xlu0 %383
    %v385 = vsel %vm276, %v184, 0.0
    %386 = vadd.xlane.f32.xlu0 %v385
    %v387 = vpop.xlane.xlu0 %386
    %v388 = vsel %vm276, %v185, 0.0
    %389 = vadd.xlane.f32.xlu0 %v388
    %v390 = vpop.xlane.xlu0 %389
    %v391 = vsel %vm276, %v186, 0.0
    %392 = vadd.xlane.f32.xlu0 %v391
    %v393 = vpop.xlane.xlu0 %392
    %v394 = vsel %vm276, %v187, 0.0
    %395 = vadd.xlane.f32.xlu0 %v394
    %v396 = vpop.xlane.xlu0 %395
    %v397 = vsel %vm276, %v188, 0.0
    %398 = vadd.xlane.f32.xlu0 %v397
    %v399 = vpop.xlane.xlu0 %398
    %v400 = vsel %vm276, %v189, 0.0
    %401 = vadd.xlane.f32.xlu0 %v400
    %v402 = vpop.xlane.xlu0 %401
    %v403 = vsel %vm276, %v190, 0.0
    %404 = vadd.xlane.f32.xlu0 %v403
    %v405 = vpop.xlane.xlu0 %404
    %v406 = vsel %vm276, %v191, 0.0
    %407 = vadd.xlane.f32.xlu0 %v406
    %v408 = vpop.xlane.xlu0 %407
    %v409 = vsel %vm276, %v192, 0.0
    %410 = vadd.xlane.f32.xlu0 %v409
    %v411 = vpop.xlane.xlu0 %410
    %v412 = vsel %vm276, %v193, 0.0
    %413 = vadd.xlane.f32.xlu0 %v412
    %v414 = vpop.xlane.xlu0 %413
    %v415 = vsel %vm276, %v194, 0.0
    %416 = vadd.xlane.f32.xlu0 %v415
    %v417 = vpop.xlane.xlu0 %416
    %v418 = vsel %vm276, %v195, 0.0
    %419 = vadd.xlane.f32.xlu0 %v418
    %v420 = vpop.xlane.xlu0 %419
    %v421 = vsel %vm276, %v196, 0.0
    %422 = vadd.xlane.f32.xlu0 %v421
    %v423 = vpop.xlane.xlu0 %422
    %v424 = vsel %vm276, %v197, 0.0
    %425 = vadd.xlane.f32.xlu0 %v424
    %v426 = vpop.xlane.xlu0 %425
    %v427 = vsel %vm276, %v198, 0.0
    %428 = vadd.xlane.f32.xlu0 %v427
    %v429 = vpop.xlane.xlu0 %428
    %v430 = vsel %vm276, %v199, 0.0
    %431 = vadd.xlane.f32.xlu0 %v430
    %v432 = vpop.xlane.xlu0 %431
    %v433 = vsel %vm276, %v200, 0.0
    %434 = vadd.xlane.f32.xlu0 %v433
    %v435 = vpop.xlane.xlu0 %434
    %v436 = vsel %vm276, %v201, 0.0
    %437 = vadd.xlane.f32.xlu0 %v436
    %v438 = vpop.xlane.xlu0 %437
    %v439 = vsel %vm276, %v202, 0.0
    %440 = vadd.xlane.f32.xlu0 %v439
    %v441 = vpop.xlane.xlu0 %440
    %v442 = vsel %vm276, %v203, 0.0
    %443 = vadd.xlane.f32.xlu0 %v442
    %v444 = vpop.xlane.xlu0 %443
    %v445 = vsel %vm276, %v204, 0.0
    %446 = vadd.xlane.f32.xlu0 %v445
    %v447 = vpop.xlane.xlu0 %446
    %v448 = vsel %vm276, %v205, 0.0
    %449 = vadd.xlane.f32.xlu0 %v448
    %v450 = vpop.xlane.xlu0 %449
    %v451 = vsel %vm276, %v206, 0.0
    %452 = vadd.xlane.f32.xlu0 %v451
    %v453 = vpop.xlane.xlu0 %452
    %v454 = vsel %vm276, %v207, 0.0
    %455 = vadd.xlane.f32.xlu0 %v454
    %v456 = vpop.xlane.xlu0 %455
    %v457 = vsel %vm276, %v208, 0.0
    %458 = vadd.xlane.f32.xlu0 %v457
    %v459 = vpop.xlane.xlu0 %458
    %v460 = vsel %vm276, %v209, 0.0
    %461 = vadd.xlane.f32.xlu0 %v460
    %v462 = vpop.xlane.xlu0 %461
    %v463 = vsel %vm276, %v210, 0.0
    %464 = vadd.xlane.f32.xlu0 %v463
    %v465 = vpop.xlane.xlu0 %464
    %v466 = vsel %vm276, %v211, 0.0
    %467 = vadd.xlane.f32.xlu0 %v466
    %v468 = vpop.xlane.xlu0 %467
    %v469 = vsel %vm276, %v212, 0.0
    %470 = vadd.xlane.f32.xlu0 %v469
    %v471 = vpop.xlane.xlu0 %470
    %v472 = vsel %vm276, %v213, 0.0
    %473 = vadd.xlane.f32.xlu0 %v472
    %v474 = vpop.xlane.xlu0 %473
    %v475 = vsel %vm276, %v214, 0.0
    %476 = vadd.xlane.f32.xlu0 %v475
    %v477 = vpop.xlane.xlu0 %476
    %v478 = vsel %vm276, %v215, 0.0
    %479 = vadd.xlane.f32.xlu0 %v478
    %v480 = vpop.xlane.xlu0 %479
    %v481 = vsel %vm276, %v216, 0.0
    %482 = vadd.xlane.f32.xlu0 %v481
    %v483 = vpop.xlane.xlu0 %482
    %v484 = vsel %vm276, %v217, 0.0
    %485 = vadd.xlane.f32.xlu0 %v484
    %v486 = vpop.xlane.xlu0 %485
    %v487 = vsel %vm276, %v218, 0.0
    %488 = vadd.xlane.f32.xlu0 %v487
    %v489 = vpop.xlane.xlu0 %488
    %v490 = vsel %vm276, %v219, 0.0
    %491 = vadd.xlane.f32.xlu0 %v490
    %v492 = vpop.xlane.xlu0 %491
    %v493 = vsel %vm276, %v220, 0.0
    %494 = vadd.xlane.f32.xlu0 %v493
    %v495 = vpop.xlane.xlu0 %494
    %v496 = vsel %vm276, %v221, 0.0
    %497 = vadd.xlane.f32.xlu0 %v496
    %v498 = vpop.xlane.xlu0 %497
    %v499 = vsel %vm276, %v222, 0.0
    %500 = vadd.xlane.f32.xlu0 %v499
    %v501 = vpop.xlane.xlu0 %500
    %v502 = vsel %vm276, %v223, 0.0
    %503 = vadd.xlane.f32.xlu0 %v502
    %v504 = vpop.xlane.xlu0 %503
    %v505 = vsel %vm276, %v224, 0.0
    %506 = vadd.xlane.f32.xlu0 %v505
    %v507 = vpop.xlane.xlu0 %506
    %v508 = vsel %vm276, %v225, 0.0
    %509 = vadd.xlane.f32.xlu0 %v508
    %v510 = vpop.xlane.xlu0 %509
    %v511 = vsel %vm276, %v226, 0.0
    %512 = vadd.xlane.f32.xlu0 %v511
    %v513 = vpop.xlane.xlu0 %512
    %v514 = vsel %vm276, %v227, 0.0
    %515 = vadd.xlane.f32.xlu0 %v514
    %v516 = vpop.xlane.xlu0 %515
    %v517 = vsel %vm276, %v228, 0.0
    %518 = vadd.xlane.f32.xlu0 %v517
    %v519 = vpop.xlane.xlu0 %518
    %v520 = vsel %vm276, %v229, 0.0
    %521 = vadd.xlane.f32.xlu0 %v520
    %v522 = vpop.xlane.xlu0 %521
    %v523 = vsel %vm276, %v230, 0.0
    %524 = vadd.xlane.f32.xlu0 %v523
    %v525 = vpop.xlane.xlu0 %524
    %v526 = vsel %vm276, %v231, 0.0
    %527 = vadd.xlane.f32.xlu0 %v526
    %v528 = vpop.xlane.xlu0 %527
    %v529 = vsel %vm276, %v232, 0.0
    %530 = vadd.xlane.f32.xlu0 %v529
    %v531 = vpop.xlane.xlu0 %530
    %v532 = vsel %vm276, %v233, 0.0
    %533 = vadd.xlane.f32.xlu0 %v532
    %v534 = vpop.xlane.xlu0 %533
    %v535 = vsel %vm276, %v234, 0.0
    %536 = vadd.xlane.f32.xlu0 %v535
    %v537 = vpop.xlane.xlu0 %536
    %v538 = vsel %vm276, %v235, 0.0
    %539 = vadd.xlane.f32.xlu0 %v538
    %v540 = vpop.xlane.xlu0 %539
    %v541 = vsel %vm276, %v236, 0.0
    %542 = vadd.xlane.f32.xlu0 %v541
    %v543 = vpop.xlane.xlu0 %542
    %v544 = vsel %vm276, %v237, 0.0
    %545 = vadd.xlane.f32.xlu0 %v544
    %v546 = vpop.xlane.xlu0 %545
    %v547 = vsel %vm276, %v238, 0.0
    %548 = vadd.xlane.f32.xlu0 %v547
    %v549 = vpop.xlane.xlu0 %548
    %v550 = vsel %vm276, %v239, 0.0
    %551 = vadd.xlane.f32.xlu0 %v550
    %v552 = vpop.xlane.xlu0 %551
    %v553 = vsel %vm276, %v240, 0.0
    %554 = vadd.xlane.f32.xlu0 %v553
    %v555 = vpop.xlane.xlu0 %554
    %v556 = vsel %vm276, %v241, 0.0
    %557 = vadd.xlane.f32.xlu0 %v556
    %v558 = vpop.xlane.xlu0 %557
    %v559 = vsel %vm276, %v242, 0.0
    %560 = vadd.xlane.f32.xlu0 %v559
    %v561 = vpop.xlane.xlu0 %560
    %v562 = vsel %vm276, %v243, 0.0
    %563 = vadd.xlane.f32.xlu0 %v562
    %v564 = vpop.xlane.xlu0 %563
    %v565 = vsel %vm276, %v244, 0.0
    %566 = vadd.xlane.f32.xlu0 %v565
    %v567 = vpop.xlane.xlu0 %566
    %v568 = vsel %vm276, %v245, 0.0
    %569 = vadd.xlane.f32.xlu0 %v568
    %v570 = vpop.xlane.xlu0 %569
    %v571 = vsel %vm276, %v246, 0.0
    %572 = vadd.xlane.f32.xlu0 %v571
    %v573 = vpop.xlane.xlu0 %572
    %v574 = vsel %vm276, %v247, 0.0
    %575 = vadd.xlane.f32.xlu0 %v574
    %v576 = vpop.xlane.xlu0 %575
    %v577 = vsel %vm276, %v248, 0.0
    %578 = vadd.xlane.f32.xlu0 %v577
    %v579 = vpop.xlane.xlu0 %578
    %v580 = vsel %vm276, %v249, 0.0
    %581 = vadd.xlane.f32.xlu0 %v580
    %v582 = vpop.xlane.xlu0 %581
    %v583 = vsel %vm276, %v250, 0.0
    %584 = vadd.xlane.f32.xlu0 %v583
    %v585 = vpop.xlane.xlu0 %584
    %v586 = vsel %vm276, %v251, 0.0
    %587 = vadd.xlane.f32.xlu0 %v586
    %v588 = vpop.xlane.xlu0 %587
    %v589 = vsel %vm276, %v252, 0.0
    %590 = vadd.xlane.f32.xlu0 %v589
    %v591 = vpop.xlane.xlu0 %590
    %v592 = vsel %vm276, %v253, 0.0
    %593 = vadd.xlane.f32.xlu0 %v592
    %v594 = vpop.xlane.xlu0 %593
    %v595 = vsel %vm276, %v254, 0.0
    %596 = vadd.xlane.f32.xlu0 %v595
    %v597 = vpop.xlane.xlu0 %596
    %v598 = vsel %vm276, %v255, 0.0
    %599 = vadd.xlane.f32.xlu0 %v598
    %v600 = vpop.xlane.xlu0 %599
    %v601 = vsel %vm276, %v256, 0.0
    %602 = vadd.xlane.f32.xlu0 %v601
    %v603 = vpop.xlane.xlu0 %602
    %v604 = vsel %vm276, %v257, 0.0
    %605 = vadd.xlane.f32.xlu0 %v604
    %v606 = vpop.xlane.xlu0 %605
    %v607 = vsel %vm276, %v258, 0.0
    %608 = vadd.xlane.f32.xlu0 %v607
    %v609 = vpop.xlane.xlu0 %608
    %v610 = vsel %vm276, %v259, 0.0
    %611 = vadd.xlane.f32.xlu0 %v610
    %v612 = vpop.xlane.xlu0 %611
    %v613 = vsel %vm276, %v260, 0.0
    %614 = vadd.xlane.f32.xlu0 %v613
    %v615 = vpop.xlane.xlu0 %614
    %v616 = vsel %vm276, %v261, 0.0
    %617 = vadd.xlane.f32.xlu0 %v616
    %v618 = vpop.xlane.xlu0 %617
    %v619 = vsel %vm276, %v262, 0.0
    %620 = vadd.xlane.f32.xlu0 %v619
    %v621 = vpop.xlane.xlu0 %620
    %v622 = vsel %vm276, %v263, 0.0
    %623 = vadd.xlane.f32.xlu0 %v622
    %v624 = vpop.xlane.xlu0 %623
    %v625 = vsel %vm276, %v264, 0.0
    %626 = vadd.xlane.f32.xlu0 %v625
    %v627 = vpop.xlane.xlu0 %626
    %v628 = vsel %vm276, %v265, 0.0
    %629 = vadd.xlane.f32.xlu0 %v628
    %v630 = vpop.xlane.xlu0 %629
    %v631 = vsel %vm276, %v266, 0.0
    %632 = vadd.xlane.f32.xlu0 %v631
    %v633 = vpop.xlane.xlu0 %632
    %v634 = vsel %vm276, %v267, 0.0
    %635 = vadd.xlane.f32.xlu0 %v634
    %v636 = vpop.xlane.xlu0 %635
    %v637 = vsel %vm276, %v268, 0.0
    %638 = vadd.xlane.f32.xlu0 %v637
    %v639 = vpop.xlane.xlu0 %638
    %v640 = vsel %vm276, %v269, 0.0
    %641 = vadd.xlane.f32.xlu0 %v640
    %v642 = vpop.xlane.xlu0 %641
    %v643 = vsel %vm276, %v270, 0.0
    %644 = vadd.xlane.f32.xlu0 %v643
    %v645 = vpop.xlane.xlu0 %644
    %v646 = vsel %vm276, %v271, 0.0
    %647 = vadd.xlane.f32.xlu0 %v646
    %v648 = vpop.xlane.xlu0 %647
    %v649 = vsel %vm276, %v272, 0.0
    %650 = vadd.xlane.f32.xlu0 %v649
    %v651 = vpop.xlane.xlu0 %650
    %v652 = vsel %vm276, %v273, 0.0
    %653 = vadd.xlane.f32.xlu0 %v652
    %v654 = vpop.xlane.xlu0 %653
    %v655 = vsel %vm276, %v274, 0.0
    %656 = vadd.xlane.f32.xlu0 %v655
    %v657 = vpop.xlane.xlu0 %656
    %v658 = vsel %vm276, %v275, 0.0
    %659 = vadd.xlane.f32.xlu0 %v658
    %v660 = vpop.xlane.xlu0 %659
    %s661 = sld [smem:[#allocation2]]
    %v662 = vstv %s661
    %v663 = vadd.f32 %v279, %v662
    %v664 = vadd.f32 %v282, %v662
    %v665 = vadd.f32 %v285, %v662
    %v666 = vadd.f32 %v288, %v662
    %v667 = vadd.f32 %v291, %v662
    %v668 = vadd.f32 %v294, %v662
    %v669 = vadd.f32 %v297, %v662
    %v670 = vadd.f32 %v300, %v662
    %v671 = vadd.f32 %v303, %v662
    %v672 = vadd.f32 %v306, %v662
    %v673 = vadd.f32 %v309, %v662
    %v674 = vadd.f32 %v312, %v662
    %v675 = vadd.f32 %v315, %v662
    %v676 = vadd.f32 %v318, %v662
    %v677 = vadd.f32 %v321, %v662
    %v678 = vadd.f32 %v324, %v662
    %v679 = vadd.f32 %v327, %v662
    %v680 = vadd.f32 %v330, %v662
    %v681 = vadd.f32 %v333, %v662
    %v682 = vadd.f32 %v336, %v662
    %v683 = vadd.f32 %v339, %v662
    %v684 = vadd.f32 %v342, %v662
    %v685 = vadd.f32 %v345, %v662
    %v686 = vadd.f32 %v348, %v662
    %v687 = vadd.f32 %v351, %v662
    %v688 = vadd.f32 %v354, %v662
    %v689 = vadd.f32 %v357, %v662
    %v690 = vadd.f32 %v360, %v662
    %v691 = vadd.f32 %v363, %v662
    %v692 = vadd.f32 %v366, %v662
    %v693 = vadd.f32 %v369, %v662
    %v694 = vadd.f32 %v372, %v662
    %v695 = vadd.f32 %v375, %v662
    %v696 = vadd.f32 %v378, %v662
    %v697 = vadd.f32 %v381, %v662
    %v698 = vadd.f32 %v384, %v662
    %v699 = vadd.f32 %v387, %v662
    %v700 = vadd.f32 %v390, %v662
    %v701 = vadd.f32 %v393, %v662
    %v702 = vadd.f32 %v396, %v662
    %v703 = vadd.f32 %v399, %v662
    %v704 = vadd.f32 %v402, %v662
    %v705 = vadd.f32 %v405, %v662
    %v706 = vadd.f32 %v408, %v662
    %v707 = vadd.f32 %v411, %v662
    %v708 = vadd.f32 %v414, %v662
    %v709 = vadd.f32 %v417, %v662
    %v710 = vadd.f32 %v420, %v662
    %v711 = vadd.f32 %v423, %v662
    %v712 = vadd.f32 %v426, %v662
    %v713 = vadd.f32 %v429, %v662
    %v714 = vadd.f32 %v432, %v662
    %v715 = vadd.f32 %v435, %v662
    %v716 = vadd.f32 %v438, %v662
    %v717 = vadd.f32 %v441, %v662
    %v718 = vadd.f32 %v444, %v662
    %v719 = vadd.f32 %v447, %v662
    %v720 = vadd.f32 %v450, %v662
    %v721 = vadd.f32 %v453, %v662
    %v722 = vadd.f32 %v456, %v662
    %v723 = vadd.f32 %v459, %v662
    %v724 = vadd.f32 %v462, %v662
    %v725 = vadd.f32 %v465, %v662
    %v726 = vadd.f32 %v468, %v662
    %v727 = vadd.f32 %v471, %v662
    %v728 = vadd.f32 %v474, %v662
    %v729 = vadd.f32 %v477, %v662
    %v730 = vadd.f32 %v480, %v662
    %v731 = vadd.f32 %v483, %v662
    %v732 = vadd.f32 %v486, %v662
    %v733 = vadd.f32 %v489, %v662
    %v734 = vadd.f32 %v492, %v662
    %v735 = vadd.f32 %v495, %v662
    %v736 = vadd.f32 %v498, %v662
    %v737 = vadd.f32 %v501, %v662
    %v738 = vadd.f32 %v504, %v662
    %v739 = vadd.f32 %v507, %v662
    %v740 = vadd.f32 %v510, %v662
    %v741 = vadd.f32 %v513, %v662
    %v742 = vadd.f32 %v516, %v662
    %v743 = vadd.f32 %v519, %v662
    %v744 = vadd.f32 %v522, %v662
    %v745 = vadd.f32 %v525, %v662
    %v746 = vadd.f32 %v528, %v662
    %v747 = vadd.f32 %v531, %v662
    %v748 = vadd.f32 %v534, %v662
    %v749 = vadd.f32 %v537, %v662
    %v750 = vadd.f32 %v540, %v662
    %v751 = vadd.f32 %v543, %v662
    %v752 = vadd.f32 %v546, %v662
    %v753 = vadd.f32 %v549, %v662
    %v754 = vadd.f32 %v552, %v662
    %v755 = vadd.f32 %v555, %v662
    %v756 = vadd.f32 %v558, %v662
    %v757 = vadd.f32 %v561, %v662
    %v758 = vadd.f32 %v564, %v662
    %v759 = vadd.f32 %v567, %v662
    %v760 = vadd.f32 %v570, %v662
    %v761 = vadd.f32 %v573, %v662
    %v762 = vadd.f32 %v576, %v662
    %v763 = vadd.f32 %v579, %v662
    %v764 = vadd.f32 %v582, %v662
    %v765 = vadd.f32 %v585, %v662
    %v766 = vadd.f32 %v588, %v662
    %v767 = vadd.f32 %v591, %v662
    %v768 = vadd.f32 %v594, %v662
    %v769 = vadd.f32 %v597, %v662
    %v770 = vadd.f32 %v600, %v662
    %v771 = vadd.f32 %v603, %v662
    %v772 = vadd.f32 %v606, %v662
    %v773 = vadd.f32 %v609, %v662
    %v774 = vadd.f32 %v612, %v662
    %v775 = vadd.f32 %v615, %v662
    %v776 = vadd.f32 %v618, %v662
    %v777 = vadd.f32 %v621, %v662
    %v778 = vadd.f32 %v624, %v662
    %v779 = vadd.f32 %v627, %v662
    %v780 = vadd.f32 %v630, %v662
    %v781 = vadd.f32 %v633, %v662
    %v782 = vadd.f32 %v636, %v662
    %v783 = vadd.f32 %v639, %v662
    %v784 = vadd.f32 %v642, %v662
    %v785 = vadd.f32 %v645, %v662
    %v786 = vadd.f32 %v648, %v662
    %v787 = vadd.f32 %v651, %v662
    %v788 = vadd.f32 %v654, %v662
    %v789 = vadd.f32 %v657, %v662
    %v790 = vadd.f32 %v660, %v662
    %v791 = vtanh.pop %v663
    %v792 = vtanh.pop %v664
    %v793 = vtanh.pop %v665
    %v794 = vtanh.pop %v666
    %v795 = vtanh.pop %v667
    %v796 = vtanh.pop %v668
    %v797 = vtanh.pop %v669
    %v798 = vtanh.pop %v670
    %v799 = vtanh.pop %v671
    %v800 = vtanh.pop %v672
    %v801 = vtanh.pop %v673
    %v802 = vtanh.pop %v674
    %v803 = vtanh.pop %v675
    %v804 = vtanh.pop %v676
    %v805 = vtanh.pop %v677
    %v806 = vtanh.pop %v678
    %v807 = vtanh.pop %v679
    %v808 = vtanh.pop %v680
    %v809 = vtanh.pop %v681
    %v810 = vtanh.pop %v682
    %v811 = vtanh.pop %v683
    %v812 = vtanh.pop %v684
    %v813 = vtanh.pop %v685
    %v814 = vtanh.pop %v686
    %v815 = vtanh.pop %v687
    %v816 = vtanh.pop %v688
    %v817 = vtanh.pop %v689
    %v818 = vtanh.pop %v690
    %v819 = vtanh.pop %v691
    %v820 = vtanh.pop %v692
    %v821 = vtanh.pop %v693
    %v822 = vtanh.pop %v694
    %v823 = vtanh.pop %v695
    %v824 = vtanh.pop %v696
    %v825 = vtanh.pop %v697
    %v826 = vtanh.pop %v698
    %v827 = vtanh.pop %v699
    %v828 = vtanh.pop %v700
    %v829 = vtanh.pop %v701
    %v830 = vtanh.pop %v702
    %v831 = vtanh.pop %v703
    %v832 = vtanh.pop %v704
    %v833 = vtanh.pop %v705
    %v834 = vtanh.pop %v706
    %v835 = vtanh.pop %v707
    %v836 = vtanh.pop %v708
    %v837 = vtanh.pop %v709
    %v838 = vtanh.pop %v710
    %v839 = vtanh.pop %v711
    %v840 = vtanh.pop %v712
    %v841 = vtanh.pop %v713
    %v842 = vtanh.pop %v714
    %v843 = vtanh.pop %v715
    %v844 = vtanh.pop %v716
    %v845 = vtanh.pop %v717
    %v846 = vtanh.pop %v718
    %v847 = vtanh.pop %v719
    %v848 = vtanh.pop %v720
    %v849 = vtanh.pop %v721
    %v850 = vtanh.pop %v722
    %v851 = vtanh.pop %v723
    %v852 = vtanh.pop %v724
    %v853 = vtanh.pop %v725
    %v854 = vtanh.pop %v726
    %v855 = vtanh.pop %v727
    %v856 = vtanh.pop %v728
    %v857 = vtanh.pop %v729
    %v858 = vtanh.pop %v730
    %v859 = vtanh.pop %v731
    %v860 = vtanh.pop %v732
    %v861 = vtanh.pop %v733
    %v862 = vtanh.pop %v734
    %v863 = vtanh.pop %v735
    %v864 = vtanh.pop %v736
    %v865 = vtanh.pop %v737
    %v866 = vtanh.pop %v738
    %v867 = vtanh.pop %v739
    %v868 = vtanh.pop %v740
    %v869 = vtanh.pop %v741
    %v870 = vtanh.pop %v742
    %v871 = vtanh.pop %v743
    %v872 = vtanh.pop %v744
    %v873 = vtanh.pop %v745
    %v874 = vtanh.pop %v746
    %v875 = vtanh.pop %v747
    %v876 = vtanh.pop %v748
    %v877 = vtanh.pop %v749
    %v878 = vtanh.pop %v750
    %v879 = vtanh.pop %v751
    %v880 = vtanh.pop %v752
    %v881 = vtanh.pop %v753
    %v882 = vtanh.pop %v754
    %v883 = vtanh.pop %v755
    %v884 = vtanh.pop %v756
    %v885 = vtanh.pop %v757
    %v886 = vtanh.pop %v758
    %v887 = vtanh.pop %v759
    %v888 = vtanh.pop %v760
    %v889 = vtanh.pop %v761
    %v890 = vtanh.pop %v762
    %v891 = vtanh.pop %v763
    %v892 = vtanh.pop %v764
    %v893 = vtanh.pop %v765
    %v894 = vtanh.pop %v766
    %v895 = vtanh.pop %v767
    %v896 = vtanh.pop %v768
    %v897 = vtanh.pop %v769
    %v898 = vtanh.pop %v770
    %v899 = vtanh.pop %v771
    %v900 = vtanh.pop %v772
    %v901 = vtanh.pop %v773
    %v902 = vtanh.pop %v774
    %v903 = vtanh.pop %v775
    %v904 = vtanh.pop %v776
    %v905 = vtanh.pop %v777
    %v906 = vtanh.pop %v778
    %v907 = vtanh.pop %v779
    %v908 = vtanh.pop %v780
    %v909 = vtanh.pop %v781
    %v910 = vtanh.pop %v782
    %v911 = vtanh.pop %v783
    %v912 = vtanh.pop %v784
    %v913 = vtanh.pop %v785
    %v914 = vtanh.pop %v786
    %v915 = vtanh.pop %v787
    %v916 = vtanh.pop %v788
    %v917 = vtanh.pop %v789
    %v918 = vtanh.pop %v790
    %v1047 = vlaneseq
    %v1048 = vand.u32 %v1047, 127
    %v1049 = vperm.slane %v791, %v1048
    %v1050 = vadd.s32 %v1048, 4294967288
    %v1051 = vperm.slane %v792, %v1050
    %vm1052 = vcmask 130112
    %v1053 = vsel %vm1052, %v1051, %v1049
    %v1054 = vadd.s32 %v1048, 4294967280
    %v1055 = vperm.slane %v793, %v1054
    %vm1056 = vcmask 195712
    %v1057 = vsel %vm1056, %v1055, %v1053
    %v1058 = vadd.s32 %v1048, 4294967272
    %v1059 = vperm.slane %v794, %v1058
    %vm1060 = vcmask 261312
    %v1061 = vsel %vm1060, %v1059, %v1057
    %v1062 = vadd.s32 %v1048, 4294967264
    %v1063 = vperm.slane %v795, %v1062
    %vm1064 = vcmask 326912
    %v1065 = vsel %vm1064, %v1063, %v1061
    %v1066 = vadd.s32 %v1048, 4294967256
    %v1067 = vperm.slane %v796, %v1066
    %vm1068 = vcmask 392512
    %v1069 = vsel %vm1068, %v1067, %v1065
    %v1070 = vadd.s32 %v1048, 4294967248
    %v1071 = vperm.slane %v797, %v1070
    %vm1072 = vcmask 458112
    %v1073 = vsel %vm1072, %v1071, %v1069
    %v1074 = vadd.s32 %v1048, 4294967240
    %v1075 = vperm.slane %v798, %v1074
    %vm1076 = vcmask 523712
    %v1077 = vsel %vm1076, %v1075, %v1073
    %v1078 = vadd.s32 %v1048, 4294967232
    %v1079 = vperm.slane %v799, %v1078
    %vm1080 = vcmask 589312
    %v1081 = vsel %vm1080, %v1079, %v1077
    %v1082 = vadd.s32 %v1048, 4294967224
    %v1083 = vperm.slane %v800, %v1082
    %vm1084 = vcmask 654912
    %v1085 = vsel %vm1084, %v1083, %v1081
    %v1086 = vadd.s32 %v1048, 4294967216
    %v1087 = vperm.slane %v801, %v1086
    %vm1088 = vcmask 720512
    %v1089 = vsel %vm1088, %v1087, %v1085
    %v1090 = vadd.s32 %v1048, 4294967208
    %v1091 = vperm.slane %v802, %v1090
    %vm1092 = vcmask 786112
    %v1093 = vsel %vm1092, %v1091, %v1089
    %v1094 = vadd.s32 %v1048, 4294967200
    %v1095 = vperm.slane %v803, %v1094
    %vm1096 = vcmask 851712
    %v1097 = vsel %vm1096, %v1095, %v1093
    %v1098 = vadd.s32 %v1048, 4294967192
    %v1099 = vperm.slane %v804, %v1098
    %vm1100 = vcmask 917312
    %v1101 = vsel %vm1100, %v1099, %v1097
    %v1102 = vadd.s32 %v1048, 4294967184
    %v1103 = vperm.slane %v805, %v1102
    %vm1104 = vcmask 982912
    %v1105 = vsel %vm1104, %v1103, %v1101
    %v1106 = vadd.s32 %v1048, 4294967176
    %v1107 = vperm.slane %v806, %v1106
    %vm1108 = vcmask 1048512
    %v1109 = vsel %vm1108, %v1107, %v1105
    %v1110 = vperm.slane %v807, %v1048
    %v1111 = vperm.slane %v808, %v1050
    %v1112 = vsel %vm1052, %v1111, %v1110
    %v1113 = vperm.slane %v809, %v1054
    %v1114 = vsel %vm1056, %v1113, %v1112
    %v1115 = vperm.slane %v810, %v1058
    %v1116 = vsel %vm1060, %v1115, %v1114
    %v1117 = vperm.slane %v811, %v1062
    %v1118 = vsel %vm1064, %v1117, %v1116
    %v1119 = vperm.slane %v812, %v1066
    %v1120 = vsel %vm1068, %v1119, %v1118
    %v1121 = vperm.slane %v813, %v1070
    %v1122 = vsel %vm1072, %v1121, %v1120
    %v1123 = vperm.slane %v814, %v1074
    %v1124 = vsel %vm1076, %v1123, %v1122
    %v1125 = vperm.slane %v815, %v1078
    %v1126 = vsel %vm1080, %v1125, %v1124
    %v1127 = vperm.slane %v816, %v1082
    %v1128 = vsel %vm1084, %v1127, %v1126
    %v1129 = vperm.slane %v817, %v1086
    %v1130 = vsel %vm1088, %v1129, %v1128
    %v1131 = vperm.slane %v818, %v1090
    %v1132 = vsel %vm1092, %v1131, %v1130
    %v1133 = vperm.slane %v819, %v1094
    %v1134 = vsel %vm1096, %v1133, %v1132
    %v1135 = vperm.slane %v820, %v1098
    %v1136 = vsel %vm1100, %v1135, %v1134
    %v1137 = vperm.slane %v821, %v1102
    %v1138 = vsel %vm1104, %v1137, %v1136
    %v1139 = vperm.slane %v822, %v1106
    %v1140 = vsel %vm1108, %v1139, %v1138
    %v1141 = vperm.slane %v823, %v1048
    %v1142 = vperm.slane %v824, %v1050
    %v1143 = vsel %vm1052, %v1142, %v1141
    %v1144 = vperm.slane %v825, %v1054
    %v1145 = vsel %vm1056, %v1144, %v1143
    %v1146 = vperm.slane %v826, %v1058
    %v1147 = vsel %vm1060, %v1146, %v1145
    %v1148 = vperm.slane %v827, %v1062
    %v1149 = vsel %vm1064, %v1148, %v1147
    %v1150 = vperm.slane %v828, %v1066
    %v1151 = vsel %vm1068, %v1150, %v1149
    %v1152 = vperm.slane %v829, %v1070
    %v1153 = vsel %vm1072, %v1152, %v1151
    %v1154 = vperm.slane %v830, %v1074
    %v1155 = vsel %vm1076, %v1154, %v1153
    %v1156 = vperm.slane %v831, %v1078
    %v1157 = vsel %vm1080, %v1156, %v1155
    %v1158 = vperm.slane %v832, %v1082
    %v1159 = vsel %vm1084, %v1158, %v1157
    %v1160 = vperm.slane %v833, %v1086
    %v1161 = vsel %vm1088, %v1160, %v1159
    %v1162 = vperm.slane %v834, %v1090
    %v1163 = vsel %vm1092, %v1162, %v1161
    %v1164 = vperm.slane %v835, %v1094
    %v1165 = vsel %vm1096, %v1164, %v1163
    %v1166 = vperm.slane %v836, %v1098
    %v1167 = vsel %vm1100, %v1166, %v1165
    %v1168 = vperm.slane %v837, %v1102
    %v1169 = vsel %vm1104, %v1168, %v1167
    %v1170 = vperm.slane %v838, %v1106
    %v1171 = vsel %vm1108, %v1170, %v1169
    %v1172 = vperm.slane %v839, %v1048
    %v1173 = vperm.slane %v840, %v1050
    %v1174 = vsel %vm1052, %v1173, %v1172
    %v1175 = vperm.slane %v841, %v1054
    %v1176 = vsel %vm1056, %v1175, %v1174
    %v1177 = vperm.slane %v842, %v1058
    %v1178 = vsel %vm1060, %v1177, %v1176
    %v1179 = vperm.slane %v843, %v1062
    %v1180 = vsel %vm1064, %v1179, %v1178
    %v1181 = vperm.slane %v844, %v1066
    %v1182 = vsel %vm1068, %v1181, %v1180
    %v1183 = vperm.slane %v845, %v1070
    %v1184 = vsel %vm1072, %v1183, %v1182
    %v1185 = vperm.slane %v846, %v1074
    %v1186 = vsel %vm1076, %v1185, %v1184
    %v1187 = vperm.slane %v847, %v1078
    %v1188 = vsel %vm1080, %v1187, %v1186
    %v1189 = vperm.slane %v848, %v1082
    %v1190 = vsel %vm1084, %v1189, %v1188
    %v1191 = vperm.slane %v849, %v1086
    %v1192 = vsel %vm1088, %v1191, %v1190
    %v1193 = vperm.slane %v850, %v1090
    %v1194 = vsel %vm1092, %v1193, %v1192
    %v1195 = vperm.slane %v851, %v1094
    %v1196 = vsel %vm1096, %v1195, %v1194
    %v1197 = vperm.slane %v852, %v1098
    %v1198 = vsel %vm1100, %v1197, %v1196
    %v1199 = vperm.slane %v853, %v1102
    %v1200 = vsel %vm1104, %v1199, %v1198
    %v1201 = vperm.slane %v854, %v1106
    %v1202 = vsel %vm1108, %v1201, %v1200
    %v1203 = vperm.slane %v855, %v1048
    %v1204 = vperm.slane %v856, %v1050
    %v1205 = vsel %vm1052, %v1204, %v1203
    %v1206 = vperm.slane %v857, %v1054
    %v1207 = vsel %vm1056, %v1206, %v1205
    %v1208 = vperm.slane %v858, %v1058
    %v1209 = vsel %vm1060, %v1208, %v1207
    %v1210 = vperm.slane %v859, %v1062
    %v1211 = vsel %vm1064, %v1210, %v1209
    %v1212 = vperm.slane %v860, %v1066
    %v1213 = vsel %vm1068, %v1212, %v1211
    %v1214 = vperm.slane %v861, %v1070
    %v1215 = vsel %vm1072, %v1214, %v1213
    %v1216 = vperm.slane %v862, %v1074
    %v1217 = vsel %vm1076, %v1216, %v1215
    %v1218 = vperm.slane %v863, %v1078
    %v1219 = vsel %vm1080, %v1218, %v1217
    %v1220 = vperm.slane %v864, %v1082
    %v1221 = vsel %vm1084, %v1220, %v1219
    %v1222 = vperm.slane %v865, %v1086
    %v1223 = vsel %vm1088, %v1222, %v1221
    %v1224 = vperm.slane %v866, %v1090
    %v1225 = vsel %vm1092, %v1224, %v1223
    %v1226 = vperm.slane %v867, %v1094
    %v1227 = vsel %vm1096, %v1226, %v1225
    %v1228 = vperm.slane %v868, %v1098
    %v1229 = vsel %vm1100, %v1228, %v1227
    %v1230 = vperm.slane %v869, %v1102
    %v1231 = vsel %vm1104, %v1230, %v1229
    %v1232 = vperm.slane %v870, %v1106
    %v1233 = vsel %vm1108, %v1232, %v1231
    %v1234 = vperm.slane %v871, %v1048
    %v1235 = vperm.slane %v872, %v1050
    %v1236 = vsel %vm1052, %v1235, %v1234
    %v1237 = vperm.slane %v873, %v1054
    %v1238 = vsel %vm1056, %v1237, %v1236
    %v1239 = vperm.slane %v874, %v1058
    %v1240 = vsel %vm1060, %v1239, %v1238
    %v1241 = vperm.slane %v875, %v1062
    %v1242 = vsel %vm1064, %v1241, %v1240
    %v1243 = vperm.slane %v876, %v1066
    %v1244 = vsel %vm1068, %v1243, %v1242
    %v1245 = vperm.slane %v877, %v1070
    %v1246 = vsel %vm1072, %v1245, %v1244
    %v1247 = vperm.slane %v878, %v1074
    %v1248 = vsel %vm1076, %v1247, %v1246
    %v1249 = vperm.slane %v879, %v1078
    %v1250 = vsel %vm1080, %v1249, %v1248
    %v1251 = vperm.slane %v880, %v1082
    %v1252 = vsel %vm1084, %v1251, %v1250
    %v1253 = vperm.slane %v881, %v1086
    %v1254 = vsel %vm1088, %v1253, %v1252
    %v1255 = vperm.slane %v882, %v1090
    %v1256 = vsel %vm1092, %v1255, %v1254
    %v1257 = vperm.slane %v883, %v1094
    %v1258 = vsel %vm1096, %v1257, %v1256
    %v1259 = vperm.slane %v884, %v1098
    %v1260 = vsel %vm1100, %v1259, %v1258
    %v1261 = vperm.slane %v885, %v1102
    %v1262 = vsel %vm1104, %v1261, %v1260
    %v1263 = vperm.slane %v886, %v1106
    %v1264 = vsel %vm1108, %v1263, %v1262
    %v1265 = vperm.slane %v887, %v1048
    %v1266 = vperm.slane %v888, %v1050
    %v1267 = vsel %vm1052, %v1266, %v1265
    %v1268 = vperm.slane %v889, %v1054
    %v1269 = vsel %vm1056, %v1268, %v1267
    %v1270 = vperm.slane %v890, %v1058
    %v1271 = vsel %vm1060, %v1270, %v1269
    %v1272 = vperm.slane %v891, %v1062
    %v1273 = vsel %vm1064, %v1272, %v1271
    %v1274 = vperm.slane %v892, %v1066
    %v1275 = vsel %vm1068, %v1274, %v1273
    %v1276 = vperm.slane %v893, %v1070
    %v1277 = vsel %vm1072, %v1276, %v1275
    %v1278 = vperm.slane %v894, %v1074
    %v1279 = vsel %vm1076, %v1278, %v1277
    %v1280 = vperm.slane %v895, %v1078
    %v1281 = vsel %vm1080, %v1280, %v1279
    %v1282 = vperm.slane %v896, %v1082
    %v1283 = vsel %vm1084, %v1282, %v1281
    %v1284 = vperm.slane %v897, %v1086
    %v1285 = vsel %vm1088, %v1284, %v1283
    %v1286 = vperm.slane %v898, %v1090
    %v1287 = vsel %vm1092, %v1286, %v1285
    %v1288 = vperm.slane %v899, %v1094
    %v1289 = vsel %vm1096, %v1288, %v1287
    %v1290 = vperm.slane %v900, %v1098
    %v1291 = vsel %vm1100, %v1290, %v1289
    %v1292 = vperm.slane %v901, %v1102
    %v1293 = vsel %vm1104, %v1292, %v1291
    %v1294 = vperm.slane %v902, %v1106
    %v1295 = vsel %vm1108, %v1294, %v1293
    %v1296 = vperm.slane %v903, %v1048
    %v1297 = vperm.slane %v904, %v1050
    %v1298 = vsel %vm1052, %v1297, %v1296
    %v1299 = vperm.slane %v905, %v1054
    %v1300 = vsel %vm1056, %v1299, %v1298
    %v1301 = vperm.slane %v906, %v1058
    %v1302 = vsel %vm1060, %v1301, %v1300
    %v1303 = vperm.slane %v907, %v1062
    %v1304 = vsel %vm1064, %v1303, %v1302
    %v1305 = vperm.slane %v908, %v1066
    %v1306 = vsel %vm1068, %v1305, %v1304
    %v1307 = vperm.slane %v909, %v1070
    %v1308 = vsel %vm1072, %v1307, %v1306
    %v1309 = vperm.slane %v910, %v1074
    %v1310 = vsel %vm1076, %v1309, %v1308
    %v1311 = vperm.slane %v911, %v1078
    %v1312 = vsel %vm1080, %v1311, %v1310
    %v1313 = vperm.slane %v912, %v1082
    %v1314 = vsel %vm1084, %v1313, %v1312
    %v1315 = vperm.slane %v913, %v1086
    %v1316 = vsel %vm1088, %v1315, %v1314
    %v1317 = vperm.slane %v914, %v1090
    %v1318 = vsel %vm1092, %v1317, %v1316
    %v1319 = vperm.slane %v915, %v1094
    %v1320 = vsel %vm1096, %v1319, %v1318
    %v1321 = vperm.slane %v916, %v1098
    %v1322 = vsel %vm1100, %v1321, %v1320
    %v1323 = vperm.slane %v917, %v1102
    %v1324 = vsel %vm1104, %v1323, %v1322
    %v1325 = vperm.slane %v918, %v1106
    %v1326 = vsel %vm1108, %v1325, %v1324
    %vm1327 = vcmask 1041409
    %v1328 = vsel %vm1327, %v1140, %v1109
    %vm1329 = vcmask 1042434
    %v1330 = vsel %vm1329, %v1171, %v1328
    %vm1331 = vcmask 1043459
    %v1332 = vsel %vm1331, %v1202, %v1330
    %vm1333 = vcmask 1044484
    %v1334 = vsel %vm1333, %v1233, %v1332
    %vm1335 = vcmask 1045509
    %v1336 = vsel %vm1335, %v1264, %v1334
    %vm1337 = vcmask 1046534
    %v1338 = vsel %vm1337, %v1295, %v1336
    %vm1339 = vcmask 1047559
    %v1340 = vsel %vm1339, %v1326, %v1338
    %1342 = vst [vmem:[#allocation3] sm:$0xff] %v1340
    // Predicated region
    $region14: #{tpu_custom_call.1} parent=1 // pred_check
      _
    $region15: #{tpu_custom_call.1} parent=1 // pred_check_branch
      %1344 = sbr.rel (0) target = $region17
    $region16: #{tpu_custom_call.1} parent=1 // pred_region
      %1346 = vsyncadd [#allocation4], 0
      %s1348 = sshll.u32 [#allocation3], 4
      %s1349 = int_to_ptr.vmem [resolvable:$true] %s1348
      %s1350 = sshll.u32 %s3, 4
      %s1351 = int_to_ptr.hbm [resolvable:$true] %s1350
      %1353 = dma.vmem_to_hbm [thread:$0]  %s1349, 128, %s1351, [#allocation4]
    $region17: #{tpu_custom_call.1} parent=1 // pred_fallthru
      _
    // Predicated region
    $region18: #{tpu_custom_call.1} parent=1 // pred_check
      _
    $region19: #{tpu_custom_call.1} parent=1 // pred_check_branch
      %1355 = sbr.rel (0) target = $region21
    $region20: #{tpu_custom_call.1} parent=1 // pred_region
      %1357 = dma.done [#allocation4], 128
    $region21: #{tpu_custom_call.1} parent=1 // pred_fallthru
      _
    %1358 = vsyncpa [#allocation4], 1

</llo_original>
